<compile_context>
chip_gen: v6e
topology: v6e:2x2x1
jax: 0.10.0
libtpu: 0.0.40
codegen_flags: <defaults>
</compile_context>

<pallas_src>
import numpy as np
import jax
import jax.numpy as jnp
from jax.experimental import pallas as pl
from jax.experimental.pallas import tpu as pltpu


def critic_kernel(state_ref, act_ref,
                  w1_ref, b1_ref,
                  w2a_ref, w2b_ref, b2_ref,
                  w3_ref, b3_ref,
                  out_ref):
    # fc1 + relu  (bf16 MXU inputs, f32 accumulation)
    x = jnp.dot(state_ref[...], w1_ref[...], preferred_element_type=jnp.float32)
    x = jnp.maximum(x + b1_ref[...], 0.0)

    # fc2 over [x, actions] via the split weight (exact), + relu
    h = jnp.dot(x.astype(jnp.bfloat16), w2a_ref[...],
                preferred_element_type=jnp.float32)
    h = h + jnp.dot(act_ref[...], w2b_ref[...],
                    preferred_element_type=jnp.float32)
    h = jnp.maximum(h + b2_ref[...], 0.0)

    # fc3 as a lane-dense (1, TM) row:  w3_row (1,64) · h (TM,64)^T  -> (1, TM)
    y = jax.lax.dot_general(w3_ref[...], h, (((1,), (1,)), ((), ())),
                            preferred_element_type=jnp.float32)
    y = y + b3_ref[0, 0]
    out_ref[...] = y[None].astype(out_ref.dtype)       # (1, 1, TM) block


def maddpg_critic_forward(state, actions, params, *, tm=512):
    """state: (B, state_dim*2), actions: (B, action_dim*2) -> (B, 1) float32."""
    w1, b1, w2a, w2b, b2, w3, b3 = params
    B = state.shape[0]
    in1 = state.shape[1]
    in_act = actions.shape[1]
    h1 = w1.shape[1]
    h2 = w2a.shape[1]

    # Batch tile: multiple of 128 (lane-dense output), capped by the batch size.
    tm = max(128, min(int(tm), int(pl.next_power_of_2(max(B, 1)))))
    grid_b = pl.cdiv(B, tm)
    b_pad = grid_b * tm
    if b_pad != B:
        state = jnp.pad(state, ((0, b_pad - B), (0, 0)))
        actions = jnp.pad(actions, ((0, b_pad - B), (0, 0)))

    # bf16 for the MXU streams; biases / fc3 kept in f32.
    state_bf = state.astype(jnp.bfloat16)
    act_bf = actions.astype(jnp.bfloat16)
    w1_bf = w1.astype(jnp.bfloat16)
    w2a_bf = w2a.astype(jnp.bfloat16)
    w2b_bf = w2b.astype(jnp.bfloat16)
    b1_f = b1.astype(jnp.float32).reshape(1, h1)
    b2_f = b2.astype(jnp.float32).reshape(1, h2)
    w3_row = w3.astype(jnp.float32).reshape(1, h2)   # fc3 weight as a row
    b3_sc = b3.astype(jnp.float32).reshape(1, 1)     # scalar in SMEM

    flops = 2 * b_pad * (in1 * h1 + h1 * h2 + in_act * h2 + h2)
    bytes_accessed = (b_pad * (in1 + in_act) * 2            # bf16 activations in
                      + b_pad * 4                            # f32 output
                      + (in1 * h1 + h1 * h2 + in_act * h2) * 2
                      + (h1 + h2 + h2 + 1) * 4)

    def pinned(shape):
        return pl.BlockSpec(shape, lambda i: tuple(0 for _ in shape))

    out = pl.pallas_call(
        critic_kernel,
        out_shape=jax.ShapeDtypeStruct((grid_b, 1, tm), jnp.float32),
        grid=(grid_b,),
        in_specs=[
            pl.BlockSpec((tm, in1), lambda i: (i, 0)),        # state tile
            pl.BlockSpec((tm, in_act), lambda i: (i, 0)),     # actions tile
            pinned((in1, h1)),                                # w1
            pinned((1, h1)),                                  # b1
            pinned((h1, h2)),                                 # w2a
            pinned((in_act, h2)),                             # w2b
            pinned((1, h2)),                                  # b2
            pinned((1, h2)),                                  # w3 (row)
            pl.BlockSpec(memory_space=pltpu.MemorySpace.SMEM),  # b3 scalar
        ],
        out_specs=pl.BlockSpec((1, 1, tm), lambda i: (i, 0, 0)),
        compiler_params=pltpu.CompilerParams(
            dimension_semantics=("parallel",),
            vmem_limit_bytes=32 * 1024 * 1024),
        cost_estimate=pl.CostEstimate(
            flops=flops, transcendentals=0, bytes_accessed=bytes_accessed),
    )(state_bf, act_bf, w1_bf, b1_f, w2a_bf, w2b_bf, b2_f, w3_row, b3_sc)

    return out.reshape(b_pad)[:B].reshape(B, 1)


def init_params(key, state_dim, action_dim, hidden_units=(64, 64)):
    """Deterministic synthetic init mirroring the module's reset_parameters."""
    h1, h2 = hidden_units
    in1 = state_dim * 2
    in2 = h1 + action_dim * 2
    ks = jax.random.split(key, 6)

    lim1 = 1.0 / np.sqrt(h1)      # module uses weight.size()[0] == out_features
    lim2 = 1.0 / np.sqrt(h2)
    lim3 = 0.003

    # weights stored as (in_features, out_features)
    w1 = jax.random.uniform(ks[0], (in1, h1), jnp.float32, -lim1, lim1)
    b1 = jax.random.uniform(ks[1], (1, h1), jnp.float32,
                            -1.0 / np.sqrt(in1), 1.0 / np.sqrt(in1))
    w2 = jax.random.uniform(ks[2], (in2, h2), jnp.float32, -lim2, lim2)
    b2 = jax.random.uniform(ks[3], (1, h2), jnp.float32,
                            -1.0 / np.sqrt(in2), 1.0 / np.sqrt(in2))
    w3 = jax.random.uniform(ks[4], (h2, 1), jnp.float32, -lim3, lim3)
    b3 = jax.random.uniform(ks[5], (1, 1), jnp.float32,
                            -1.0 / np.sqrt(h2), 1.0 / np.sqrt(h2))

    # split fc2 weight into the part that multiplies relu(fc1(state)) and the
    # part that multiplies the concatenated actions
    w2a = w2[:h1, :]
    w2b = w2[h1:, :]
    return (w1, b1, w2a, w2b, b2, w3, b3)


def reference_forward(state, actions, params):
    (w1, b1, w2a, w2b, b2, w3, b3) = params
    x = jnp.maximum(state @ w1 + b1, 0.0)
    h = jnp.maximum(x @ w2a + actions @ w2b + b2, 0.0)
    return h @ w3 + b3


if __name__ == "__main__":
    # small config: state_dim=8, action_dim=2, batch=300 (exercises multi-tile
    # grid + batch padding with tm=128), hidden=(64, 64)
    state_dim, action_dim, batch = 8, 2, 300
    key = jax.random.PRNGKey(0)
    k_params, k_state, k_act = jax.random.split(key, 3)

    params = init_params(k_params, state_dim, action_dim)
    state = jax.random.normal(k_state, (batch, state_dim * 2), jnp.float32)
    actions = jax.random.normal(k_act, (batch, action_dim * 2), jnp.float32)

    out = maddpg_critic_forward(state, actions, params, tm=128)
    out = jax.block_until_ready(out)

    ref = reference_forward(state, actions, params)
    # bf16 MXU inputs with f32 accumulation -> loose-ish tolerance vs f32 ref.
    np.testing.assert_allclose(np.asarray(out), np.asarray(ref),
                               rtol=3e-2, atol=3e-2)

    print("KERNEL_OK")
</pallas_src>

<mosaic_0001>
module attributes {stable_mosaic.version = 11 : i64} {
  func.func @critic_kernel(%arg0: i32, %arg1: memref<128x16xbf16, #tpu.memory_space<vmem>>, %arg2: memref<128x4xbf16, #tpu.memory_space<vmem>>, %arg3: memref<16x64xbf16, #tpu.memory_space<vmem>>, %arg4: memref<1x64xf32, #tpu.memory_space<vmem>>, %arg5: memref<64x64xbf16, #tpu.memory_space<vmem>>, %arg6: memref<4x64xbf16, #tpu.memory_space<vmem>>, %arg7: memref<1x64xf32, #tpu.memory_space<vmem>>, %arg8: memref<1x64xf32, #tpu.memory_space<vmem>>, %arg9: memref<1x1xf32, #tpu.memory_space<smem>>, %arg10: memref<1x1x128xf32, #tpu.memory_space<vmem>>) attributes {dimension_semantics = [#tpu.dimension_semantics<parallel>], iteration_bounds = array<i64: 3>, scalar_prefetch = 0 : i64, scratch_operands = 0 : i64, tpu.core_type = #tpu.core_type<tc>, window_params = [{transform_indices = @transform_0, window_bounds = array<i64: 128, 16>}, {transform_indices = @transform_1, window_bounds = array<i64: 128, 4>}, {pipeline_mode = #tpu.pipeline_mode<synchronous>, transform_indices = @transform_2, window_bounds = array<i64: 16, 64>}, {pipeline_mode = #tpu.pipeline_mode<synchronous>, transform_indices = @transform_3, window_bounds = array<i64: 1, 64>}, {pipeline_mode = #tpu.pipeline_mode<synchronous>, transform_indices = @transform_4, window_bounds = array<i64: 64, 64>}, {pipeline_mode = #tpu.pipeline_mode<synchronous>, transform_indices = @transform_5, window_bounds = array<i64: 4, 64>}, {pipeline_mode = #tpu.pipeline_mode<synchronous>, transform_indices = @transform_6, window_bounds = array<i64: 1, 64>}, {pipeline_mode = #tpu.pipeline_mode<synchronous>, transform_indices = @transform_7, window_bounds = array<i64: 1, 64>}, {transform_indices = @transform_8, window_bounds = array<i64: 1, 1>}, {transform_indices = @transform_9, window_bounds = array<i64: 1, 1, 128>}]} {
    %c0 = arith.constant 0 : index
    %c0_0 = arith.constant 0 : index
    %0 = vector.load %arg1[%c0, %c0_0] : memref<128x16xbf16, #tpu.memory_space<vmem>>, vector<128x16xbf16>
    %c0_1 = arith.constant 0 : index
    %c0_2 = arith.constant 0 : index
    %1 = vector.load %arg3[%c0_1, %c0_2] : memref<16x64xbf16, #tpu.memory_space<vmem>>, vector<16x64xbf16>
    %cst = arith.constant dense<0.000000e+00> : vector<128x64xf32>
    %2 = tpu.matmul %0, %1, %cst {dimension_numbers = #tpu.dot_dimension_numbers<[1], [0], [0], [1], [0, 0, 1, 1], [], []>} : vector<128x16xbf16>, vector<16x64xbf16>, vector<128x64xf32> -> vector<128x64xf32>
    %c0_3 = arith.constant 0 : index
    %c0_4 = arith.constant 0 : index
    %3 = vector.load %arg4[%c0_3, %c0_4] : memref<1x64xf32, #tpu.memory_space<vmem>>, vector<1x64xf32>
    %4 = vector.broadcast %3 : vector<1x64xf32> to vector<128x64xf32>
    %5 = arith.addf %2, %4 : vector<128x64xf32>
    %cst_5 = arith.constant 0.000000e+00 : f32
    %6 = vector.broadcast %cst_5 : f32 to vector<128x64xf32>
    %7 = arith.maximumf %5, %6 : vector<128x64xf32>
    %8 = arith.truncf %7 : vector<128x64xf32> to vector<128x64xbf16>
    %c0_6 = arith.constant 0 : index
    %c0_7 = arith.constant 0 : index
    %9 = vector.load %arg5[%c0_6, %c0_7] : memref<64x64xbf16, #tpu.memory_space<vmem>>, vector<64x64xbf16>
    %cst_8 = arith.constant dense<0.000000e+00> : vector<128x64xf32>
    %10 = tpu.matmul %8, %9, %cst_8 {dimension_numbers = #tpu.dot_dimension_numbers<[1], [0], [0], [1], [0, 0, 1, 1], [], []>} : vector<128x64xbf16>, vector<64x64xbf16>, vector<128x64xf32> -> vector<128x64xf32>
    %c0_9 = arith.constant 0 : index
    %c0_10 = arith.constant 0 : index
    %11 = vector.load %arg2[%c0_9, %c0_10] : memref<128x4xbf16, #tpu.memory_space<vmem>>, vector<128x4xbf16>
    %c0_11 = arith.constant 0 : index
    %c0_12 = arith.constant 0 : index
    %12 = vector.load %arg6[%c0_11, %c0_12] : memref<4x64xbf16, #tpu.memory_space<vmem>>, vector<4x64xbf16>
    %cst_13 = arith.constant dense<0.000000e+00> : vector<128x64xf32>
    %13 = tpu.matmul %11, %12, %cst_13 {dimension_numbers = #tpu.dot_dimension_numbers<[1], [0], [0], [1], [0, 0, 1, 1], [], []>} : vector<128x4xbf16>, vector<4x64xbf16>, vector<128x64xf32> -> vector<128x64xf32>
    %14 = arith.addf %10, %13 : vector<128x64xf32>
    %c0_14 = arith.constant 0 : index
    %c0_15 = arith.constant 0 : index
    %15 = vector.load %arg7[%c0_14, %c0_15] : memref<1x64xf32, #tpu.memory_space<vmem>>, vector<1x64xf32>
    %16 = vector.broadcast %15 : vector<1x64xf32> to vector<128x64xf32>
    %17 = arith.addf %14, %16 : vector<128x64xf32>
    %cst_16 = arith.constant 0.000000e+00 : f32
    %18 = vector.broadcast %cst_16 : f32 to vector<128x64xf32>
    %19 = arith.maximumf %17, %18 : vector<128x64xf32>
    %c0_17 = arith.constant 0 : index
    %c0_18 = arith.constant 0 : index
    %20 = vector.load %arg8[%c0_17, %c0_18] : memref<1x64xf32, #tpu.memory_space<vmem>>, vector<1x64xf32>
    %cst_19 = arith.constant dense<0.000000e+00> : vector<1x128xf32>
    %21 = tpu.matmul %20, %19, %cst_19 {dimension_numbers = #tpu.dot_dimension_numbers<[1], [1], [0], [0], [0, 0, 1, 0], [], []>} : vector<1x64xf32>, vector<128x64xf32>, vector<1x128xf32> -> vector<1x128xf32>
    %c0_20 = arith.constant 0 : index
    %c0_21 = arith.constant 0 : index
    %22 = memref.load %arg9[%c0_20, %c0_21] : memref<1x1xf32, #tpu.memory_space<smem>>
    %23 = vector.broadcast %22 : f32 to vector<1x128xf32>
    %24 = arith.addf %21, %23 : vector<1x128xf32>
    %25 = vector.shape_cast %24 : vector<1x128xf32> to vector<1x1x128xf32>
    %c0_22 = arith.constant 0 : index
    %c0_23 = arith.constant 0 : index
    %c0_24 = arith.constant 0 : index
    %26 = vector.load %arg10[%c0_22, %c0_23, %c0_24] : memref<1x1x128xf32, #tpu.memory_space<vmem>>, vector<1x1x128xf32>
    tpu.vector_store %arg10[%c0_22, %c0_23, %c0_24], %25 {strides = array<i32>} : memref<1x1x128xf32, #tpu.memory_space<vmem>>, vector<1x1x128xf32>,
    return
  }
  func.func @transform_0(%arg0: i32) -> (i32, i32) {
    %c0_i32 = arith.constant 0 : i32
    %c0_i32_0 = arith.constant 0 : i32
    return %arg0, %c0_i32 : i32, i32
  }
  func.func @transform_1(%arg0: i32) -> (i32, i32) {
    %c0_i32 = arith.constant 0 : i32
    %c0_i32_0 = arith.constant 0 : i32
    return %arg0, %c0_i32 : i32, i32
  }
  func.func @transform_2(%arg0: i32) -> (i32, i32) {
    %c0_i32 = arith.constant 0 : i32
    %c0_i32_0 = arith.constant 0 : i32
    %c0_i32_1 = arith.constant 0 : i32
    return %c0_i32, %c0_i32_0 : i32, i32
  }
  func.func @transform_3(%arg0: i32) -> (i32, i32) {
    %c0_i32 = arith.constant 0 : i32
    %c0_i32_0 = arith.constant 0 : i32
    %c0_i32_1 = arith.constant 0 : i32
    return %c0_i32, %c0_i32_0 : i32, i32
  }
  func.func @transform_4(%arg0: i32) -> (i32, i32) {
    %c0_i32 = arith.constant 0 : i32
    %c0_i32_0 = arith.constant 0 : i32
    %c0_i32_1 = arith.constant 0 : i32
    return %c0_i32, %c0_i32_0 : i32, i32
  }
  func.func @transform_5(%arg0: i32) -> (i32, i32) {
    %c0_i32 = arith.constant 0 : i32
    %c0_i32_0 = arith.constant 0 : i32
    %c0_i32_1 = arith.constant 0 : i32
    return %c0_i32, %c0_i32_0 : i32, i32
  }
  func.func @transform_6(%arg0: i32) -> (i32, i32) {
    %c0_i32 = arith.constant 0 : i32
    %c0_i32_0 = arith.constant 0 : i32
    %c0_i32_1 = arith.constant 0 : i32
    return %c0_i32, %c0_i32_0 : i32, i32
  }
  func.func @transform_7(%arg0: i32) -> (i32, i32) {
    %c0_i32 = arith.constant 0 : i32
    %c0_i32_0 = arith.constant 0 : i32
    %c0_i32_1 = arith.constant 0 : i32
    return %c0_i32, %c0_i32_0 : i32, i32
  }
  func.func @transform_8(%arg0: i32) -> (i32, i32) {
    %c0_i32 = arith.constant 0 : i32
    %c0_i32_0 = arith.constant 0 : i32
    %c0_i32_1 = arith.constant 0 : i32
    return %c0_i32, %c0_i32_0 : i32, i32
  }
  func.func @transform_9(%arg0: i32) -> (i32, i32, i32) {
    %c0_i32 = arith.constant 0 : i32
    %c0_i32_0 = arith.constant 0 : i32
    %c0_i32_1 = arith.constant 0 : i32
    return %arg0, %c0_i32, %c0_i32_0 : i32, i32, i32
  }
}

</mosaic_0001>

<llo_original>
// kernel: tpu_custom_call.1
$region0: #{tpu_custom_call.1}
  #allocation0 [shape = 'u32[]', space=smem, size = 0x4, offset = 0x4, fixed_abs, tag = 'smem constant byte address 0x4 - core index']
  #allocation1 [shape = 'u32[144,128]{1,0:T(1,128)}', space=vmem, size = 0x12000, scoped, tag = 'internal scratch']
  #allocation2 [shape = 'f32[1,1]{1,0:T(1,128)S(6)}', space=smem, size = 0x200, scoped, tag = 'scoped memory for tpu_custom_call.1']
  %s0 = inlined_call_operand.vmem [shape: bf16[384,16], index: 0, kind: input, shape index: {}]
  %s1 = inlined_call_operand.vmem [shape: bf16[384,4], index: 1, kind: input, shape index: {}]
  %s2 = inlined_call_operand.vmem [shape: bf16[16,64], index: 2, kind: input, shape index: {}]
  %s3 = inlined_call_operand.vmem [shape: f32[1,64], index: 3, kind: input, shape index: {}]
  %s4 = inlined_call_operand.vmem [shape: bf16[64,64], index: 4, kind: input, shape index: {}]
  %s5 = inlined_call_operand.vmem [shape: bf16[4,64], index: 5, kind: input, shape index: {}]
  %s6 = inlined_call_operand.vmem [shape: f32[1,64], index: 6, kind: input, shape index: {}]
  %s7 = inlined_call_operand.vmem [shape: f32[1,64], index: 7, kind: input, shape index: {}]
  %s8 = inlined_call_operand.<no memory space> [shape: f32[1,1], index: 8, kind: input, shape index: {}]
  %s9 = inlined_call_operand.hbm [shape: f32[3,1,128], index: 9, kind: output, shape index: {}]
  %s10 = sld [smem:[#allocation0]]
  $region69: #{tpu_custom_call.1} parent=0
    _
  %s12 = ssub.s32 1, %s10
  %s13 = scalar_select 0, %s12, %s10
  %14 = sst [smem:[#allocation2]] %s8
  $region1: #{tpu_custom_call.1} parent=0
    #allocation3 [shape = 'u8[1024]{0}', space=vmem, size = 0x400, scoped, tag = 'output window, operand 0']
    #allocation4 [shape = 's32[2]{0}', space=sflag, size = 0x8, scoped, tag = 'scoped memory for tpu_custom_call.1']
    %15 = vsyncpa [#allocation4], 0
    %s16 = scalar_lea.sflag [#allocation4], 1
    %17 = vsyncpa %s16, 0
    loop: start=0, step=1, limit=5
    $region2: #{tpu_custom_call.1} parent=1 // loop_pre_header
      _
    $region3: #{tpu_custom_call.1} parent=1 // loop_header
      %s19 = sphi 0, %s23
      %p20 = scmp.ge.s32.totalorder %s19, 5
      %s29 = sphi 0, %s31
      %s32 = sphi 0, %s29
      %s33 = sphi 0, %s32
      %s49 = sphi 0, %s33
      %s55 = sphi 0, %s57
      %s58 = sphi 0, %s55
      %s59 = sphi 0, %s58
      %s75 = sphi 0, %s59
      %s79 = sphi 0, %s79
      %s81 = sphi 0, %s79
      %s82 = sphi 0, %s81
      %s96 = sphi 0, %s82
      %s100 = sphi 0, %s100
      %s102 = sphi 0, %s100
      %s103 = sphi 0, %s102
      %s117 = sphi 0, %s103
      %s121 = sphi 0, %s121
      %s123 = sphi 0, %s121
      %s124 = sphi 0, %s123
      %s138 = sphi 0, %s124
      %s142 = sphi 0, %s142
      %s144 = sphi 0, %s142
      %s145 = sphi 0, %s144
      %s159 = sphi 0, %s145
      %s163 = sphi 0, %s163
      %s165 = sphi 0, %s163
      %s166 = sphi 0, %s165
      %s180 = sphi 0, %s166
      %s184 = sphi 0, %s184
      %s186 = sphi 0, %s184
      %s187 = sphi 0, %s186
      %s201 = sphi 0, %s187
      %s205 = sphi 0, %s205
      %s207 = sphi 0, %s205
      %s208 = sphi 0, %s207
      %s222 = sphi 0, %s208
      %s228 = sphi 0, %s230
      %s231 = sphi 0, %s228
      %s232 = sphi 0, %s231
      %s248 = sphi 0, %s232
    $region4: #{tpu_custom_call.1} parent=1 // loop_header_branch
      %22 = sbr.rel (%p20) target = $region8
    $region5: #{tpu_custom_call.1} parent=1 // loop_body
      %s24 = ssub.s32 %s19, 1
      %s25 = ssub.s32 %s19, 2
      %s26 = sadd.s32 %s19, 1
      %s27 = ssub.s32 %s19, %s26
      %p28 = scmp.eq.s32.totalorder %s27, 0
      %s30 = sadd.s32 %s29, 1
      %s31 = scalar_select %p28, %s29, %s30
      %p34 = pneg %p28
      %p35 = scmp.eq.s32.totalorder %s19, 2
      %p36 = por %p34, %p35
      %p37 = scmp.ne.s32.totalorder %s29, %s32
      %p38 = scmp.eq.s32.totalorder %s19, 0
      %p39 = por %p37, %p38
      %p40 = scmp.ne.s32.totalorder %s29, %s32
      %p41 = scmp.eq.s32.totalorder %s24, 2
      %p42 = por %p40, %p41
      %p43 = scmp.ne.s32.totalorder %s32, %s33
      %p44 = scmp.eq.s32.totalorder %s24, 0
      %p45 = por %p43, %p44
      %p46 = scmp.ne.s32.totalorder %s32, %s33
      %p47 = scmp.eq.s32.totalorder %s25, 2
      %p48 = por %p46, %p47
      %p50 = scmp.ne.s32.totalorder %s33, %s49
      %p51 = scmp.eq.s32.totalorder %s25, 0
      %p52 = por %p50, %p51
      %s53 = ssub.s32 %s19, %s26
      %p54 = scmp.eq.s32.totalorder %s53, 0
      %s56 = sadd.s32 %s55, 1
      %s57 = scalar_select %p54, %s55, %s56
      %p60 = pneg %p54
      %p61 = scmp.eq.s32.totalorder %s19, 2
      %p62 = por %p60, %p61
      %p63 = scmp.ne.s32.totalorder %s55, %s58
      %p64 = scmp.eq.s32.totalorder %s19, 0
      %p65 = por %p63, %p64
      %p66 = scmp.ne.s32.totalorder %s55, %s58
      %p67 = scmp.eq.s32.totalorder %s24, 2
      %p68 = por %p66, %p67
      %p69 = scmp.ne.s32.totalorder %s58, %s59
      %p70 = scmp.eq.s32.totalorder %s24, 0
      %p71 = por %p69, %p70
      %p72 = scmp.ne.s32.totalorder %s58, %s59
      %p73 = scmp.eq.s32.totalorder %s25, 2
      %p74 = por %p72, %p73
      %p76 = scmp.ne.s32.totalorder %s59, %s75
      %p77 = scmp.eq.s32.totalorder %s25, 0
      %p78 = por %p76, %p77
      %s80 = sadd.s32 %s79, 1
      %p83 = scmp.eq.s32.totalorder %s19, 2
      %p84 = scmp.ne.s32.totalorder %s79, %s81
      %p85 = scmp.eq.s32.totalorder %s19, 0
      %p86 = por %p84, %p85
      %p87 = scmp.ne.s32.totalorder %s79, %s81
      %p88 = scmp.eq.s32.totalorder %s24, 2
      %p89 = por %p87, %p88
      %p90 = scmp.ne.s32.totalorder %s81, %s82
      %p91 = scmp.eq.s32.totalorder %s24, 0
      %p92 = por %p90, %p91
      %p93 = scmp.ne.s32.totalorder %s81, %s82
      %p94 = scmp.eq.s32.totalorder %s25, 2
      %p95 = por %p93, %p94
      %p97 = scmp.ne.s32.totalorder %s82, %s96
      %p98 = scmp.eq.s32.totalorder %s25, 0
      %p99 = por %p97, %p98
      %s101 = sadd.s32 %s100, 1
      %p104 = scmp.eq.s32.totalorder %s19, 2
      %p105 = scmp.ne.s32.totalorder %s100, %s102
      %p106 = scmp.eq.s32.totalorder %s19, 0
      %p107 = por %p105, %p106
      %p108 = scmp.ne.s32.totalorder %s100, %s102
      %p109 = scmp.eq.s32.totalorder %s24, 2
      %p110 = por %p108, %p109
      %p111 = scmp.ne.s32.totalorder %s102, %s103
      %p112 = scmp.eq.s32.totalorder %s24, 0
      %p113 = por %p111, %p112
      %p114 = scmp.ne.s32.totalorder %s102, %s103
      %p115 = scmp.eq.s32.totalorder %s25, 2
      %p116 = por %p114, %p115
      %p118 = scmp.ne.s32.totalorder %s103, %s117
      %p119 = scmp.eq.s32.totalorder %s25, 0
      %p120 = por %p118, %p119
      %s122 = sadd.s32 %s121, 1
      %p125 = scmp.eq.s32.totalorder %s19, 2
      %p126 = scmp.ne.s32.totalorder %s121, %s123
      %p127 = scmp.eq.s32.totalorder %s19, 0
      %p128 = por %p126, %p127
      %p129 = scmp.ne.s32.totalorder %s121, %s123
      %p130 = scmp.eq.s32.totalorder %s24, 2
      %p131 = por %p129, %p130
      %p132 = scmp.ne.s32.totalorder %s123, %s124
      %p133 = scmp.eq.s32.totalorder %s24, 0
      %p134 = por %p132, %p133
      %p135 = scmp.ne.s32.totalorder %s123, %s124
      %p136 = scmp.eq.s32.totalorder %s25, 2
      %p137 = por %p135, %p136
      %p139 = scmp.ne.s32.totalorder %s124, %s138
      %p140 = scmp.eq.s32.totalorder %s25, 0
      %p141 = por %p139, %p140
      %s143 = sadd.s32 %s142, 1
      %p146 = scmp.eq.s32.totalorder %s19, 2
      %p147 = scmp.ne.s32.totalorder %s142, %s144
      %p148 = scmp.eq.s32.totalorder %s19, 0
      %p149 = por %p147, %p148
      %p150 = scmp.ne.s32.totalorder %s142, %s144
      %p151 = scmp.eq.s32.totalorder %s24, 2
      %p152 = por %p150, %p151
      %p153 = scmp.ne.s32.totalorder %s144, %s145
      %p154 = scmp.eq.s32.totalorder %s24, 0
      %p155 = por %p153, %p154
      %p156 = scmp.ne.s32.totalorder %s144, %s145
      %p157 = scmp.eq.s32.totalorder %s25, 2
      %p158 = por %p156, %p157
      %p160 = scmp.ne.s32.totalorder %s145, %s159
      %p161 = scmp.eq.s32.totalorder %s25, 0
      %p162 = por %p160, %p161
      %s164 = sadd.s32 %s163, 1
      %p167 = scmp.eq.s32.totalorder %s19, 2
      %p168 = scmp.ne.s32.totalorder %s163, %s165
      %p169 = scmp.eq.s32.totalorder %s19, 0
      %p170 = por %p168, %p169
      %p171 = scmp.ne.s32.totalorder %s163, %s165
      %p172 = scmp.eq.s32.totalorder %s24, 2
      %p173 = por %p171, %p172
      %p174 = scmp.ne.s32.totalorder %s165, %s166
      %p175 = scmp.eq.s32.totalorder %s24, 0
      %p176 = por %p174, %p175
      %p177 = scmp.ne.s32.totalorder %s165, %s166
      %p178 = scmp.eq.s32.totalorder %s25, 2
      %p179 = por %p177, %p178
      %p181 = scmp.ne.s32.totalorder %s166, %s180
      %p182 = scmp.eq.s32.totalorder %s25, 0
      %p183 = por %p181, %p182
      %s185 = sadd.s32 %s184, 1
      %p188 = scmp.eq.s32.totalorder %s19, 2
      %p189 = scmp.ne.s32.totalorder %s184, %s186
      %p190 = scmp.eq.s32.totalorder %s19, 0
      %p191 = por %p189, %p190
      %p192 = scmp.ne.s32.totalorder %s184, %s186
      %p193 = scmp.eq.s32.totalorder %s24, 2
      %p194 = por %p192, %p193
      %p195 = scmp.ne.s32.totalorder %s186, %s187
      %p196 = scmp.eq.s32.totalorder %s24, 0
      %p197 = por %p195, %p196
      %p198 = scmp.ne.s32.totalorder %s186, %s187
      %p199 = scmp.eq.s32.totalorder %s25, 2
      %p200 = por %p198, %p199
      %p202 = scmp.ne.s32.totalorder %s187, %s201
      %p203 = scmp.eq.s32.totalorder %s25, 0
      %p204 = por %p202, %p203
      %s206 = sadd.s32 %s205, 1
      %p209 = scmp.eq.s32.totalorder %s19, 2
      %p210 = scmp.ne.s32.totalorder %s205, %s207
      %p211 = scmp.eq.s32.totalorder %s19, 0
      %p212 = por %p210, %p211
      %p213 = scmp.ne.s32.totalorder %s205, %s207
      %p214 = scmp.eq.s32.totalorder %s24, 2
      %p215 = por %p213, %p214
      %p216 = scmp.ne.s32.totalorder %s207, %s208
      %p217 = scmp.eq.s32.totalorder %s24, 0
      %p218 = por %p216, %p217
      %p219 = scmp.ne.s32.totalorder %s207, %s208
      %p220 = scmp.eq.s32.totalorder %s25, 2
      %p221 = por %p219, %p220
      %p223 = scmp.ne.s32.totalorder %s208, %s222
      %p224 = scmp.eq.s32.totalorder %s25, 0
      %p225 = por %p223, %p224
      %s226 = ssub.s32 %s19, %s26
      %p227 = scmp.eq.s32.totalorder %s226, 0
      %s229 = sadd.s32 %s228, 1
      %s230 = scalar_select %p227, %s228, %s229
      %p233 = pneg %p227
      %p234 = scmp.eq.s32.totalorder %s19, 2
      %p235 = por %p233, %p234
      %p236 = scmp.ne.s32.totalorder %s228, %s231
      %p237 = scmp.eq.s32.totalorder %s19, 0
      %p238 = por %p236, %p237
      %p239 = scmp.ne.s32.totalorder %s228, %s231
      %p240 = scmp.eq.s32.totalorder %s24, 2
      %p241 = por %p239, %p240
      %p242 = scmp.ne.s32.totalorder %s231, %s232
      %p243 = scmp.eq.s32.totalorder %s24, 0
      %p244 = por %p242, %p243
      %p245 = scmp.ne.s32.totalorder %s231, %s232
      %p246 = scmp.eq.s32.totalorder %s25, 2
      %p247 = por %p245, %p246
      %p249 = scmp.ne.s32.totalorder %s232, %s248
      %p250 = scmp.eq.s32.totalorder %s25, 0
      %p251 = por %p249, %p250
      %p252 = scmp.le.s32.totalorder 1, %s19
      %p253 = scmp.lt.s32.totalorder %s19, 4
      %p254 = pnand %p252, %p253
      %p255 = pneg %p254
      // Predicated region
      $region9: #{tpu_custom_call.1} parent=5 // pred_check
        _
      $region10: #{tpu_custom_call.1} parent=5 // pred_check_branch
        %257 = sbr.rel (%p254) target = $region12
      $region11: #{tpu_custom_call.1} parent=5 // pred_region
        %s258 = ssub.s32 %s19, 1
        // Predicated region
        $region13: #{tpu_custom_call.1} parent=11 // pred_check
          %p259 = pneg %p92
        $region14: #{tpu_custom_call.1} parent=11 // pred_check_branch
          %261 = sbr.rel (%p259) target = $region16
        $region15: #{tpu_custom_call.1} parent=11 // pred_region
          _
        $region16: #{tpu_custom_call.1} parent=11 // pred_fallthru
          _
        // Predicated region
        $region17: #{tpu_custom_call.1} parent=11 // pred_check
          %p262 = pneg %p113
        $region18: #{tpu_custom_call.1} parent=11 // pred_check_branch
          %264 = sbr.rel (%p262) target = $region20
        $region19: #{tpu_custom_call.1} parent=11 // pred_region
          _
        $region20: #{tpu_custom_call.1} parent=11 // pred_fallthru
          _
        // Predicated region
        $region21: #{tpu_custom_call.1} parent=11 // pred_check
          %p265 = pneg %p134
        $region22: #{tpu_custom_call.1} parent=11 // pred_check_branch
          %267 = sbr.rel (%p265) target = $region24
        $region23: #{tpu_custom_call.1} parent=11 // pred_region
          _
        $region24: #{tpu_custom_call.1} parent=11 // pred_fallthru
          _
        // Predicated region
        $region25: #{tpu_custom_call.1} parent=11 // pred_check
          %p268 = pneg %p155
        $region26: #{tpu_custom_call.1} parent=11 // pred_check_branch
          %270 = sbr.rel (%p268) target = $region28
        $region27: #{tpu_custom_call.1} parent=11 // pred_region
          _
        $region28: #{tpu_custom_call.1} parent=11 // pred_fallthru
          _
        // Predicated region
        $region29: #{tpu_custom_call.1} parent=11 // pred_check
          %p271 = pneg %p176
        $region30: #{tpu_custom_call.1} parent=11 // pred_check_branch
          %273 = sbr.rel (%p271) target = $region32
        $region31: #{tpu_custom_call.1} parent=11 // pred_region
          _
        $region32: #{tpu_custom_call.1} parent=11 // pred_fallthru
          _
        // Predicated region
        $region33: #{tpu_custom_call.1} parent=11 // pred_check
          %p274 = pneg %p197
        $region34: #{tpu_custom_call.1} parent=11 // pred_check_branch
          %276 = sbr.rel (%p274) target = $region36
        $region35: #{tpu_custom_call.1} parent=11 // pred_region
          _
        $region36: #{tpu_custom_call.1} parent=11 // pred_fallthru
          _
        // Predicated region
        $region37: #{tpu_custom_call.1} parent=11 // pred_check
          %p277 = pneg %p218
        $region38: #{tpu_custom_call.1} parent=11 // pred_check_branch
          %279 = sbr.rel (%p277) target = $region40
        $region39: #{tpu_custom_call.1} parent=11 // pred_region
          _
        $region40: #{tpu_custom_call.1} parent=11 // pred_fallthru
          _
      $region12: #{tpu_custom_call.1} parent=5 // pred_fallthru
        _
      %p280 = scmp.lt.s32.totalorder %s19, 3
      // Predicated region
      $region41: #{tpu_custom_call.1} parent=5 // pred_check
        %p281 = pneg %p280
      $region42: #{tpu_custom_call.1} parent=5 // pred_check_branch
        %283 = sbr.rel (%p281) target = $region44
      $region43: #{tpu_custom_call.1} parent=5 // pred_region
        // Predicated region
        $region45: #{tpu_custom_call.1} parent=43 // pred_check
          %p284 = pneg %p39
        $region46: #{tpu_custom_call.1} parent=43 // pred_check_branch
          %286 = sbr.rel (%p284) target = $region48
        $region47: #{tpu_custom_call.1} parent=43 // pred_region
          %s287 = smul.u32 16, %s19
          %p288 = scmp.lt.s32.totalorder %s287, 47
          %s289 = scalar_select %p288, %s287, 47
          %s290 = smul.addr %s289, 4
          %s291 = scalar_lea.vmem %s0, %s290
          %s292 = smul.u32 16, %s19
        $region48: #{tpu_custom_call.1} parent=43 // pred_fallthru
          _
        // Predicated region
        $region49: #{tpu_custom_call.1} parent=43 // pred_check
          %p293 = pneg %p65
        $region50: #{tpu_custom_call.1} parent=43 // pred_check_branch
          %295 = sbr.rel (%p293) target = $region52
        $region51: #{tpu_custom_call.1} parent=43 // pred_region
          %s296 = smul.u32 16, %s19
          %p297 = scmp.lt.s32.totalorder %s296, 47
          %s298 = scalar_select %p297, %s296, 47
          %s299 = smul.addr %s298, 4
          %s300 = scalar_lea.vmem %s1, %s299
          %s301 = smul.u32 16, %s19
        $region52: #{tpu_custom_call.1} parent=43 // pred_fallthru
          _
      $region44: #{tpu_custom_call.1} parent=5 // pred_fallthru
        _
      %p302 = scmp.le.s32.totalorder 1, %s19
      %p303 = scmp.lt.s32.totalorder %s19, 4
      %p304 = pnand %p302, %p303
      %p305 = pneg %p304
      // Predicated region
      $region53: #{tpu_custom_call.1} parent=5 // pred_check
        _
      $region54: #{tpu_custom_call.1} parent=5 // pred_check_branch
        %307 = sbr.rel (%p304) target = $region56
      $region55: #{tpu_custom_call.1} parent=5 // pred_region
        %s308 = ssub.s32 %s19, 1
        %s309 = smul.u32 16, %s24
        %p310 = scmp.lt.s32.totalorder %s309, 47
        %s311 = scalar_select %p310, %s309, 47
        %s312 = smul.addr %s311, 4
        %s313 = scalar_lea.vmem %s0, %s312
        %p314 = pneg %p45
        %p315 = pneg %p42
        %s316 = smul.u32 16, %s24
        %p317 = scmp.lt.s32.totalorder %s316, 47
        %s318 = scalar_select %p317, %s316, 47
        %s319 = smul.addr %s318, 4
        %s320 = scalar_lea.vmem %s1, %s319
        %p321 = pneg %p71
        %p322 = pneg %p68
        %p323 = pneg %p92
        %p324 = pneg %p89
        %p325 = pneg %p113
        %p326 = pneg %p110
        %p327 = pneg %p134
        %p328 = pneg %p131
        %p329 = pneg %p155
        %p330 = pneg %p152
        %p331 = pneg %p176
        %p332 = pneg %p173
        %p333 = pneg %p197
        %p334 = pneg %p194
        %p335 = pneg %p218
        %p336 = pneg %p215
        %p337 = pneg %p244
        %p338 = pneg %p241
        %s339 = sand.u32 %s231, 1
        %s340 = scalar_lea.sflag [#allocation4], %s339
        %s341 = sand.u32 %s231, 1
        %s342 = scalar_lea.vmem [#allocation3], %s341
        %s343 = smul.u32 16, %s24
        %p344 = scmp.lt.s32.totalorder %s343, 47
        %s345 = scalar_select %p344, %s343, 47
        %s346 = smul.addr %s345, 4
        %s347 = scalar_lea.vmem %s0, %s346
        %s348 = smul.u32 16, %s24
        %s349 = smul.u32 16, %s24
        %p350 = scmp.lt.s32.totalorder %s349, 47
        %s351 = scalar_select %p350, %s349, 47
        %s352 = smul.addr %s351, 4
        %s353 = scalar_lea.vmem %s1, %s352
        %s354 = smul.u32 16, %s24
        %v356 = vld [vmem:[%s347] sm:$0xf]
        %v357 = vld [vmem:[%s347 + $0x4] sm:$0xf]
        %v358 = vld [vmem:[%s347 + $0x8] sm:$0xf]
        %v359 = vld [vmem:[%s347 + $0xc] sm:$0xf]
        %v360 = vld [vmem:[%s347 + $0x10] sm:$0xf]
        %v361 = vld [vmem:[%s347 + $0x14] sm:$0xf]
        %v362 = vld [vmem:[%s347 + $0x18] sm:$0xf]
        %v363 = vld [vmem:[%s347 + $0x1c] sm:$0xf]
        %v364 = vld [vmem:[%s347 + $0x20] sm:$0xf]
        %v365 = vld [vmem:[%s347 + $0x24] sm:$0xf]
        %v366 = vld [vmem:[%s347 + $0x28] sm:$0xf]
        %v367 = vld [vmem:[%s347 + $0x2c] sm:$0xf]
        %v368 = vld [vmem:[%s347 + $0x30] sm:$0xf]
        %v369 = vld [vmem:[%s347 + $0x34] sm:$0xf]
        %v370 = vld [vmem:[%s347 + $0x38] sm:$0xf]
        %v371 = vld [vmem:[%s347 + $0x3c] sm:$0xf]
        %v372 = vld [vmem:[%s2] sm:$0xf]
        %v373 = vld [vmem:[%s2 + $0x4] sm:$0xf]
        %v374 = vld [vmem:[%s3] sm:$0x1]
        %v376 = vlaneseq
        %v377 = vshrl.u32 %v376, 7
        %v378 = vsub.s32 0, %v377
        %v379 = vrot.slane %v374, %v378
        %v397 = vunpack.c.l.b16 %v356
        %v398 = vunpack.c.l.b16 %v357
        %v399 = vunpack.c.l.b16 %v358
        %v400 = vunpack.c.l.b16 %v359
        %v401 = vunpack.c.l.b16 %v360
        %v402 = vunpack.c.l.b16 %v361
        %v403 = vunpack.c.l.b16 %v362
        %v404 = vunpack.c.l.b16 %v363
        %v405 = vunpack.c.l.b16 %v364
        %v406 = vunpack.c.l.b16 %v365
        %v407 = vunpack.c.l.b16 %v366
        %v408 = vunpack.c.l.b16 %v367
        %v409 = vunpack.c.l.b16 %v368
        %v410 = vunpack.c.l.b16 %v369
        %v411 = vunpack.c.l.b16 %v370
        %v412 = vunpack.c.l.b16 %v371
        %v413 = vpack.c.b16 %v398, %v397
        %v414 = vpack.c.b16 %v400, %v399
        %v415 = vpack.c.b16 %v402, %v401
        %v416 = vpack.c.b16 %v404, %v403
        %v417 = vpack.c.b16 %v406, %v405
        %v418 = vpack.c.b16 %v408, %v407
        %v419 = vpack.c.b16 %v410, %v409
        %v420 = vpack.c.b16 %v412, %v411
        %v423 = vunpack.c.l.b16 %v372
        %v424 = vunpack.c.l.b16 %v373
        %v425 = vpack.c.b16 %v424, %v423
        %vm427 = vcmask 130048
        %v429 = vsel %vm427, %v413, 0
        %v432 = vsel %vm427, %v414, 0
        %v435 = vsel %vm427, %v415, 0
        %v438 = vsel %vm427, %v416, 0
        %v441 = vsel %vm427, %v417, 0
        %v444 = vsel %vm427, %v418, 0
        %v447 = vsel %vm427, %v419, 0
        %v450 = vsel %vm427, %v420, 0
        %452 = vmatprep.subr.bf16.mxu0 0
        %453 = vmatpush1.bf16.msra.mxu0 0
        %454 = vmatprep.subr.bf16.mxu0 0
        %455 = vmatpush1.bf16.msra.mxu0 0
        %456 = vmatprep.subr.bf16.mxu0 0
        %457 = vmatpush1.bf16.msra.mxu0 0
        %458 = vmatprep.subr.bf16.mxu0 0
        %459 = vmatpush1.bf16.msra.mxu0 0
        %460 = vmatprep.subr.bf16.mxu0 0
        %461 = vmatpush1.bf16.msra.mxu0 0
        %462 = vmatprep.subr.bf16.mxu0 0
        %463 = vmatpush1.bf16.msra.mxu0 0
        %464 = vmatprep.subr.bf16.mxu0 0
        %465 = vmatpush1.bf16.msra.mxu0 0
        %466 = vmatprep.subr.bf16.mxu0 0
        %467 = vmatpush1.bf16.msra.mxu0 %v425
        %468 = vmatprep.subr.bf16.mxu0 0
        %469 = vmatpush2.bf16.msra.mxu0 0
        %470 = vmatprep.subr.bf16.mxu0 0
        %471 = vmatpush2.bf16.msra.mxu0 0
        %472 = vmatprep.subr.bf16.mxu0 0
        %473 = vmatpush2.bf16.msra.mxu0 0
        %474 = vmatprep.subr.bf16.mxu0 0
        %475 = vmatpush2.bf16.msra.mxu0 0
        %476 = vmatprep.subr.bf16.mxu0 0
        %477 = vmatpush2.bf16.msra.mxu0 0
        %478 = vmatprep.subr.bf16.mxu0 0
        %479 = vmatpush2.bf16.msra.mxu0 0
        %480 = vmatprep.subr.bf16.mxu0 0
        %481 = vmatpush2.bf16.msra.mxu0 0
        %482 = vmatprep.subr.bf16.mxu0 0
        %483 = vmatpush2.bf16.msra.mxu0 0
        %484 = vmatprep.mubr.bf16.mxu0 0
        %485 = vmatmul.mubr.bf16.gmra.mxu0 %v429
        %v486 = vpop.f32.mrf.mxu0
        %v487 = vadd.f32 %v379, %v486
        %v488 = vpop.f32.mrf.mxu0
        %v489 = vpop.f32.mrf.mxu0
        %v490 = vadd.f32 %v379, %v489
        %v491 = vpop.f32.mrf.mxu0
        %492 = vmatprep.mubr.bf16.mxu0 0
        %493 = vmatmul.mubr.bf16.gmra.mxu0 %v432
        %v494 = vpop.f32.mrf.mxu0
        %v495 = vadd.f32 %v379, %v494
        %v496 = vpop.f32.mrf.mxu0
        %v497 = vpop.f32.mrf.mxu0
        %v498 = vadd.f32 %v379, %v497
        %v499 = vpop.f32.mrf.mxu0
        %500 = vmatprep.mubr.bf16.mxu0 0
        %501 = vmatmul.mubr.bf16.gmra.mxu0 %v435
        %v502 = vpop.f32.mrf.mxu0
        %v503 = vadd.f32 %v379, %v502
        %v504 = vpop.f32.mrf.mxu0
        %v505 = vpop.f32.mrf.mxu0
        %v506 = vadd.f32 %v379, %v505
        %v507 = vpop.f32.mrf.mxu0
        %508 = vmatprep.mubr.bf16.mxu0 0
        %509 = vmatmul.mubr.bf16.gmra.mxu0 %v438
        %v510 = vpop.f32.mrf.mxu0
        %v511 = vadd.f32 %v379, %v510
        %v512 = vpop.f32.mrf.mxu0
        %v513 = vpop.f32.mrf.mxu0
        %v514 = vadd.f32 %v379, %v513
        %v515 = vpop.f32.mrf.mxu0
        %516 = vmatprep.mubr.bf16.mxu0 0
        %517 = vmatmul.mubr.bf16.gmra.mxu0 %v441
        %v518 = vpop.f32.mrf.mxu0
        %v519 = vadd.f32 %v379, %v518
        %v520 = vpop.f32.mrf.mxu0
        %v521 = vpop.f32.mrf.mxu0
        %v522 = vadd.f32 %v379, %v521
        %v523 = vpop.f32.mrf.mxu0
        %524 = vmatprep.mubr.bf16.mxu0 0
        %525 = vmatmul.mubr.bf16.gmra.mxu0 %v444
        %v526 = vpop.f32.mrf.mxu0
        %v527 = vadd.f32 %v379, %v526
        %v528 = vpop.f32.mrf.mxu0
        %v529 = vpop.f32.mrf.mxu0
        %v530 = vadd.f32 %v379, %v529
        %v531 = vpop.f32.mrf.mxu0
        %532 = vmatprep.mubr.bf16.mxu0 0
        %533 = vmatmul.mubr.bf16.gmra.mxu0 %v447
        %v534 = vpop.f32.mrf.mxu0
        %v535 = vadd.f32 %v379, %v534
        %v536 = vpop.f32.mrf.mxu0
        %v537 = vpop.f32.mrf.mxu0
        %v538 = vadd.f32 %v379, %v537
        %v539 = vpop.f32.mrf.mxu0
        %540 = vmatprep.mubr.bf16.mxu0 0
        %541 = vmatmul.mubr.bf16.gmra.mxu0 %v450
        %v542 = vpop.f32.mrf.mxu0
        %v543 = vadd.f32 %v379, %v542
        %v544 = vpop.f32.mrf.mxu0
        %v545 = vpop.f32.mrf.mxu0
        %v546 = vadd.f32 %v379, %v545
        %v547 = vpop.f32.mrf.mxu0
        %548 = vdwg.mxu0
        %v549 = vmax.f32 %v487, 0.0
        %v550 = vmax.f32 %v490, 0.0
        %v551 = vmax.f32 %v495, 0.0
        %v552 = vmax.f32 %v498, 0.0
        %v553 = vmax.f32 %v503, 0.0
        %v554 = vmax.f32 %v506, 0.0
        %v555 = vmax.f32 %v511, 0.0
        %v556 = vmax.f32 %v514, 0.0
        %v557 = vmax.f32 %v519, 0.0
        %v558 = vmax.f32 %v522, 0.0
        %v559 = vmax.f32 %v527, 0.0
        %v560 = vmax.f32 %v530, 0.0
        %v561 = vmax.f32 %v535, 0.0
        %v562 = vmax.f32 %v538, 0.0
        %v563 = vmax.f32 %v543, 0.0
        %v564 = vmax.f32 %v546, 0.0
        %v565 = vpack.c.bf16 %v550, %v549
        %v566 = vpack.c.bf16 %v552, %v551
        %v567 = vpack.c.bf16 %v554, %v553
        %v568 = vpack.c.bf16 %v556, %v555
        %v569 = vpack.c.bf16 %v558, %v557
        %v570 = vpack.c.bf16 %v560, %v559
        %v571 = vpack.c.bf16 %v562, %v561
        %v572 = vpack.c.bf16 %v564, %v563
        %v573 = vld [vmem:[%s4] sm:$0xf]
        %v574 = vld [vmem:[%s4 + $0x4] sm:$0xf]
        %v575 = vld [vmem:[%s4 + $0x8] sm:$0xf]
        %v576 = vld [vmem:[%s4 + $0xc] sm:$0xf]
        %v577 = vld [vmem:[%s4 + $0x10] sm:$0xf]
        %v578 = vld [vmem:[%s4 + $0x14] sm:$0xf]
        %v579 = vld [vmem:[%s4 + $0x18] sm:$0xf]
        %v580 = vld [vmem:[%s4 + $0x1c] sm:$0xf]
        %v581 = vld [vmem:[%s353] sm:$0xf]
        %v582 = vld [vmem:[%s353 + $0x4] sm:$0xf]
        %v583 = vld [vmem:[%s353 + $0x8] sm:$0xf]
        %v584 = vld [vmem:[%s353 + $0xc] sm:$0xf]
        %v585 = vld [vmem:[%s353 + $0x10] sm:$0xf]
        %v586 = vld [vmem:[%s353 + $0x14] sm:$0xf]
        %v587 = vld [vmem:[%s353 + $0x18] sm:$0xf]
        %v588 = vld [vmem:[%s353 + $0x1c] sm:$0xf]
        %v589 = vld [vmem:[%s353 + $0x20] sm:$0xf]
        %v590 = vld [vmem:[%s353 + $0x24] sm:$0xf]
        %v591 = vld [vmem:[%s353 + $0x28] sm:$0xf]
        %v592 = vld [vmem:[%s353 + $0x2c] sm:$0xf]
        %v593 = vld [vmem:[%s353 + $0x30] sm:$0xf]
        %v594 = vld [vmem:[%s353 + $0x34] sm:$0xf]
        %v595 = vld [vmem:[%s353 + $0x38] sm:$0xf]
        %v596 = vld [vmem:[%s353 + $0x3c] sm:$0xf]
        %v597 = vld [vmem:[%s5] sm:$0x3]
        %v614 = vunpack.c.l.b16 %v581
        %v615 = vunpack.c.l.b16 %v582
        %v616 = vunpack.c.l.b16 %v583
        %v617 = vunpack.c.l.b16 %v584
        %v618 = vunpack.c.l.b16 %v585
        %v619 = vunpack.c.l.b16 %v586
        %v620 = vunpack.c.l.b16 %v587
        %v621 = vunpack.c.l.b16 %v588
        %v622 = vunpack.c.l.b16 %v589
        %v623 = vunpack.c.l.b16 %v590
        %v624 = vunpack.c.l.b16 %v591
        %v625 = vunpack.c.l.b16 %v592
        %v626 = vunpack.c.l.b16 %v593
        %v627 = vunpack.c.l.b16 %v594
        %v628 = vunpack.c.l.b16 %v595
        %v629 = vunpack.c.l.b16 %v596
        %v630 = vpack.c.b16 %v615, %v614
        %v631 = vpack.c.b16 %v617, %v616
        %v632 = vpack.c.b16 %v619, %v618
        %v633 = vpack.c.b16 %v621, %v620
        %v634 = vpack.c.b16 %v623, %v622
        %v635 = vpack.c.b16 %v625, %v624
        %v636 = vpack.c.b16 %v627, %v626
        %v637 = vpack.c.b16 %v629, %v628
        %vm638 = vcmask 31744
        %v640 = vsel %vm638, %v630, 0
        %v643 = vsel %vm638, %v631, 0
        %v646 = vsel %vm638, %v632, 0
        %v649 = vsel %vm638, %v633, 0
        %v652 = vsel %vm638, %v634, 0
        %v655 = vsel %vm638, %v635, 0
        %v658 = vsel %vm638, %v636, 0
        %v661 = vsel %vm638, %v637, 0
        %vm663 = vcmask 1041408
        %v665 = vsel %vm663, %v597, 0
        %667 = vmatprep.subr.bf16.mxu0 0
        %668 = vmatpush1.bf16.msra.mxu0 0
        %669 = vmatprep.subr.bf16.mxu0 0
        %670 = vmatpush1.bf16.msra.mxu0 0
        %671 = vmatprep.subr.bf16.mxu0 0
        %672 = vmatpush1.bf16.msra.mxu0 0
        %673 = vmatprep.subr.bf16.mxu0 0
        %674 = vmatpush1.bf16.msra.mxu0 0
        %675 = vmatprep.subr.bf16.mxu0 0
        %676 = vmatpush1.bf16.msra.mxu0 0
        %677 = vmatprep.subr.bf16.mxu0 0
        %678 = vmatpush1.bf16.msra.mxu0 0
        %679 = vmatprep.subr.bf16.mxu0 0
        %680 = vmatpush1.bf16.msra.mxu0 0
        %681 = vmatprep.subr.bf16.mxu0 0
        %682 = vmatpush1.bf16.msra.mxu0 %v665
        %683 = vmatprep.subr.bf16.mxu0 0
        %684 = vmatpush2.bf16.msra.mxu0 0
        %685 = vmatprep.subr.bf16.mxu0 0
        %686 = vmatpush2.bf16.msra.mxu0 0
        %687 = vmatprep.subr.bf16.mxu0 0
        %688 = vmatpush2.bf16.msra.mxu0 0
        %689 = vmatprep.subr.bf16.mxu0 0
        %690 = vmatpush2.bf16.msra.mxu0 0
        %691 = vmatprep.subr.bf16.mxu0 0
        %692 = vmatpush2.bf16.msra.mxu0 0
        %693 = vmatprep.subr.bf16.mxu0 0
        %694 = vmatpush2.bf16.msra.mxu0 0
        %695 = vmatprep.subr.bf16.mxu0 0
        %696 = vmatpush2.bf16.msra.mxu0 0
        %697 = vmatprep.subr.bf16.mxu0 0
        %698 = vmatpush2.bf16.msra.mxu0 0
        %699 = vmatprep.mubr.bf16.mxu0 0
        %700 = vmatmul.mubr.bf16.gmra.mxu0 %v640
        %v701 = vpop.f32.mrf.mxu0
        %v702 = vadd.f32 0.0, %v701
        %v703 = vpop.f32.mrf.mxu0
        %v704 = vpop.f32.mrf.mxu0
        %v705 = vadd.f32 0.0, %v704
        %v706 = vpop.f32.mrf.mxu0
        %707 = vmatprep.mubr.bf16.mxu0 0
        %708 = vmatmul.mubr.bf16.gmra.mxu0 %v643
        %v709 = vpop.f32.mrf.mxu0
        %v710 = vadd.f32 0.0, %v709
        %v711 = vpop.f32.mrf.mxu0
        %v712 = vpop.f32.mrf.mxu0
        %v713 = vadd.f32 0.0, %v712
        %v714 = vpop.f32.mrf.mxu0
        %715 = vmatprep.mubr.bf16.mxu0 0
        %716 = vmatmul.mubr.bf16.gmra.mxu0 %v646
        %v717 = vpop.f32.mrf.mxu0
        %v718 = vadd.f32 0.0, %v717
        %v719 = vpop.f32.mrf.mxu0
        %v720 = vpop.f32.mrf.mxu0
        %v721 = vadd.f32 0.0, %v720
        %v722 = vpop.f32.mrf.mxu0
        %723 = vmatprep.mubr.bf16.mxu0 0
        %724 = vmatmul.mubr.bf16.gmra.mxu0 %v649
        %v725 = vpop.f32.mrf.mxu0
        %v726 = vadd.f32 0.0, %v725
        %v727 = vpop.f32.mrf.mxu0
        %v728 = vpop.f32.mrf.mxu0
        %v729 = vadd.f32 0.0, %v728
        %v730 = vpop.f32.mrf.mxu0
        %731 = vmatprep.mubr.bf16.mxu0 0
        %732 = vmatmul.mubr.bf16.gmra.mxu0 %v652
        %v733 = vpop.f32.mrf.mxu0
        %v734 = vadd.f32 0.0, %v733
        %v735 = vpop.f32.mrf.mxu0
        %v736 = vpop.f32.mrf.mxu0
        %v737 = vadd.f32 0.0, %v736
        %v738 = vpop.f32.mrf.mxu0
        %739 = vmatprep.mubr.bf16.mxu0 0
        %740 = vmatmul.mubr.bf16.gmra.mxu0 %v655
        %v741 = vpop.f32.mrf.mxu0
        %v742 = vadd.f32 0.0, %v741
        %v743 = vpop.f32.mrf.mxu0
        %v744 = vpop.f32.mrf.mxu0
        %v745 = vadd.f32 0.0, %v744
        %v746 = vpop.f32.mrf.mxu0
        %747 = vmatprep.mubr.bf16.mxu0 0
        %748 = vmatmul.mubr.bf16.gmra.mxu0 %v658
        %v749 = vpop.f32.mrf.mxu0
        %v750 = vadd.f32 0.0, %v749
        %v751 = vpop.f32.mrf.mxu0
        %v752 = vpop.f32.mrf.mxu0
        %v753 = vadd.f32 0.0, %v752
        %v754 = vpop.f32.mrf.mxu0
        %755 = vmatprep.mubr.bf16.mxu0 0
        %756 = vmatmul.mubr.bf16.gmra.mxu0 %v661
        %v757 = vpop.f32.mrf.mxu0
        %v758 = vadd.f32 0.0, %v757
        %v759 = vpop.f32.mrf.mxu0
        %v760 = vpop.f32.mrf.mxu0
        %v761 = vadd.f32 0.0, %v760
        %v762 = vpop.f32.mrf.mxu0
        %763 = vdwg.mxu0
        %v772 = vunpack.c.l.b16 %v573
        %v773 = vunpack.c.l.b16 %v574
        %v774 = vunpack.c.l.b16 %v575
        %v775 = vunpack.c.l.b16 %v576
        %v776 = vunpack.c.l.b16 %v577
        %v777 = vunpack.c.l.b16 %v578
        %v778 = vunpack.c.l.b16 %v579
        %v779 = vunpack.c.l.b16 %v580
        %v780 = vpack.c.b16 %v773, %v772
        %v781 = vpack.c.b16 %v775, %v774
        %v782 = vpack.c.b16 %v777, %v776
        %v783 = vpack.c.b16 %v779, %v778
        %vm788 = vcmask 523264
        %v790 = vsel %vm788, %v565, 0
        %v793 = vsel %vm788, %v566, 0
        %v796 = vsel %vm788, %v567, 0
        %v799 = vsel %vm788, %v568, 0
        %v802 = vsel %vm788, %v569, 0
        %v805 = vsel %vm788, %v570, 0
        %v808 = vsel %vm788, %v571, 0
        %v811 = vsel %vm788, %v572, 0
        %813 = vmatprep.subr.bf16.mxu0 0
        %814 = vmatpush1.bf16.msra.mxu0 0
        %815 = vmatprep.subr.bf16.mxu0 0
        %816 = vmatpush1.bf16.msra.mxu0 0
        %817 = vmatprep.subr.bf16.mxu0 0
        %818 = vmatpush1.bf16.msra.mxu0 0
        %819 = vmatprep.subr.bf16.mxu0 0
        %820 = vmatpush1.bf16.msra.mxu0 0
        %821 = vmatprep.subr.bf16.mxu0 0
        %822 = vmatpush1.bf16.msra.mxu0 %v783
        %823 = vmatprep.subr.bf16.mxu0 0
        %824 = vmatpush1.bf16.msra.mxu0 %v782
        %825 = vmatprep.subr.bf16.mxu0 0
        %826 = vmatpush1.bf16.msra.mxu0 %v781
        %827 = vmatprep.subr.bf16.mxu0 0
        %828 = vmatpush1.bf16.msra.mxu0 %v780
        %829 = vmatprep.subr.bf16.mxu0 0
        %830 = vmatpush2.bf16.msra.mxu0 0
        %831 = vmatprep.subr.bf16.mxu0 0
        %832 = vmatpush2.bf16.msra.mxu0 0
        %833 = vmatprep.subr.bf16.mxu0 0
        %834 = vmatpush2.bf16.msra.mxu0 0
        %835 = vmatprep.subr.bf16.mxu0 0
        %836 = vmatpush2.bf16.msra.mxu0 0
        %837 = vmatprep.subr.bf16.mxu0 0
        %838 = vmatpush2.bf16.msra.mxu0 0
        %839 = vmatprep.subr.bf16.mxu0 0
        %840 = vmatpush2.bf16.msra.mxu0 0
        %841 = vmatprep.subr.bf16.mxu0 0
        %842 = vmatpush2.bf16.msra.mxu0 0
        %843 = vmatprep.subr.bf16.mxu0 0
        %844 = vmatpush2.bf16.msra.mxu0 0
        %845 = vmatprep.mubr.bf16.mxu0 0
        %846 = vmatmul.mubr.bf16.gmra.mxu0 %v790
        %v847 = vpop.f32.mrf.mxu0
        %v848 = vadd.f32 %v702, %v847
        %v849 = vpop.f32.mrf.mxu0
        %v850 = vpop.f32.mrf.mxu0
        %v851 = vadd.f32 %v705, %v850
        %v852 = vpop.f32.mrf.mxu0
        %853 = vmatprep.mubr.bf16.mxu0 0
        %854 = vmatmul.mubr.bf16.gmra.mxu0 %v793
        %v855 = vpop.f32.mrf.mxu0
        %v856 = vadd.f32 %v710, %v855
        %v857 = vpop.f32.mrf.mxu0
        %v858 = vpop.f32.mrf.mxu0
        %v859 = vadd.f32 %v713, %v858
        %v860 = vpop.f32.mrf.mxu0
        %861 = vmatprep.mubr.bf16.mxu0 0
        %862 = vmatmul.mubr.bf16.gmra.mxu0 %v796
        %v863 = vpop.f32.mrf.mxu0
        %v864 = vadd.f32 %v718, %v863
        %v865 = vpop.f32.mrf.mxu0
        %v866 = vpop.f32.mrf.mxu0
        %v867 = vadd.f32 %v721, %v866
        %v868 = vpop.f32.mrf.mxu0
        %869 = vmatprep.mubr.bf16.mxu0 0
        %870 = vmatmul.mubr.bf16.gmra.mxu0 %v799
        %v871 = vpop.f32.mrf.mxu0
        %v872 = vadd.f32 %v726, %v871
        %v873 = vpop.f32.mrf.mxu0
        %v874 = vpop.f32.mrf.mxu0
        %v875 = vadd.f32 %v729, %v874
        %v876 = vpop.f32.mrf.mxu0
        %877 = vmatprep.mubr.bf16.mxu0 0
        %878 = vmatmul.mubr.bf16.gmra.mxu0 %v802
        %v879 = vpop.f32.mrf.mxu0
        %v880 = vadd.f32 %v734, %v879
        %v881 = vpop.f32.mrf.mxu0
        %v882 = vpop.f32.mrf.mxu0
        %v883 = vadd.f32 %v737, %v882
        %v884 = vpop.f32.mrf.mxu0
        %885 = vmatprep.mubr.bf16.mxu0 0
        %886 = vmatmul.mubr.bf16.gmra.mxu0 %v805
        %v887 = vpop.f32.mrf.mxu0
        %v888 = vadd.f32 %v742, %v887
        %v889 = vpop.f32.mrf.mxu0
        %v890 = vpop.f32.mrf.mxu0
        %v891 = vadd.f32 %v745, %v890
        %v892 = vpop.f32.mrf.mxu0
        %893 = vmatprep.mubr.bf16.mxu0 0
        %894 = vmatmul.mubr.bf16.gmra.mxu0 %v808
        %v895 = vpop.f32.mrf.mxu0
        %v896 = vadd.f32 %v750, %v895
        %v897 = vpop.f32.mrf.mxu0
        %v898 = vpop.f32.mrf.mxu0
        %v899 = vadd.f32 %v753, %v898
        %v900 = vpop.f32.mrf.mxu0
        %901 = vmatprep.mubr.bf16.mxu0 0
        %902 = vmatmul.mubr.bf16.gmra.mxu0 %v811
        %v903 = vpop.f32.mrf.mxu0
        %v904 = vadd.f32 %v758, %v903
        %v905 = vpop.f32.mrf.mxu0
        %v906 = vpop.f32.mrf.mxu0
        %v907 = vadd.f32 %v761, %v906
        %v908 = vpop.f32.mrf.mxu0
        %909 = vdwg.mxu0
        %v910 = vld [vmem:[%s6] sm:$0x1]
        %v912 = vlaneseq
        %v913 = vshrl.u32 %v912, 7
        %v914 = vsub.s32 0, %v913
        %v915 = vrot.slane %v910, %v914
        %v917 = vadd.f32 %v848, %v915
        %v918 = vadd.f32 %v851, %v915
        %v919 = vadd.f32 %v856, %v915
        %v920 = vadd.f32 %v859, %v915
        %v921 = vadd.f32 %v864, %v915
        %v922 = vadd.f32 %v867, %v915
        %v923 = vadd.f32 %v872, %v915
        %v924 = vadd.f32 %v875, %v915
        %v925 = vadd.f32 %v880, %v915
        %v926 = vadd.f32 %v883, %v915
        %v927 = vadd.f32 %v888, %v915
        %v928 = vadd.f32 %v891, %v915
        %v929 = vadd.f32 %v896, %v915
        %v930 = vadd.f32 %v899, %v915
        %v931 = vadd.f32 %v904, %v915
        %v932 = vadd.f32 %v907, %v915
        %v933 = vmax.f32 %v917, 0.0
        %v934 = vmax.f32 %v918, 0.0
        %v935 = vmax.f32 %v919, 0.0
        %v936 = vmax.f32 %v920, 0.0
        %v937 = vmax.f32 %v921, 0.0
        %v938 = vmax.f32 %v922, 0.0
        %v939 = vmax.f32 %v923, 0.0
        %v940 = vmax.f32 %v924, 0.0
        %v941 = vmax.f32 %v925, 0.0
        %v942 = vmax.f32 %v926, 0.0
        %v943 = vmax.f32 %v927, 0.0
        %v944 = vmax.f32 %v928, 0.0
        %v945 = vmax.f32 %v929, 0.0
        %v946 = vmax.f32 %v930, 0.0
        %v947 = vmax.f32 %v931, 0.0
        %v948 = vmax.f32 %v932, 0.0
        %v949 = vld [vmem:[%s7] sm:$0x1]
        %s950 = sld [smem:[#allocation2]]
        %v951 = vstv %s950
        %v953 = vsel %vm788, %v949, 0
        %v956 = vsel %vm788, %v933, 0
        %v959 = vsel %vm788, %v934, 0
        %v962 = vsel %vm788, %v935, 0
        %v965 = vsel %vm788, %v936, 0
        %v968 = vsel %vm788, %v937, 0
        %v971 = vsel %vm788, %v938, 0
        %v974 = vsel %vm788, %v939, 0
        %v977 = vsel %vm788, %v940, 0
        %v980 = vsel %vm788, %v941, 0
        %v983 = vsel %vm788, %v942, 0
        %v986 = vsel %vm788, %v943, 0
        %v989 = vsel %vm788, %v944, 0
        %v992 = vsel %vm788, %v945, 0
        %v995 = vsel %vm788, %v946, 0
        %v998 = vsel %vm788, %v947, 0
        %v1001 = vsel %vm788, %v948, 0
        %1003 = vmatprep.subr.mxu0 0.0
        %1004 = vmatpush1.xpose.msra.mxu0 %v1001
        %1005 = vmatprep.subr.mxu0 0.0
        %1006 = vmatpush1.xpose.msra.mxu0 %v998
        %1007 = vmatprep.subr.mxu0 0.0
        %1008 = vmatpush1.xpose.msra.mxu0 %v995
        %1009 = vmatprep.subr.mxu0 0.0
        %1010 = vmatpush1.xpose.msra.mxu0 %v992
        %1011 = vmatprep.subr.mxu0 0.0
        %1012 = vmatpush1.xpose.msra.mxu0 %v989
        %1013 = vmatprep.subr.mxu0 0.0
        %1014 = vmatpush1.xpose.msra.mxu0 %v986
        %1015 = vmatprep.subr.mxu0 0.0
        %1016 = vmatpush1.xpose.msra.mxu0 %v983
        %1017 = vmatprep.subr.mxu0 0.0
        %1018 = vmatpush1.xpose.msra.mxu0 %v980
        %1019 = vmatprep.subr.mxu0 0.0
        %1020 = vmatpush1.xpose.msra.mxu0 %v977
        %1021 = vmatprep.subr.mxu0 0.0
        %1022 = vmatpush1.xpose.msra.mxu0 %v974
        %1023 = vmatprep.subr.mxu0 0.0
        %1024 = vmatpush1.xpose.msra.mxu0 %v971
        %1025 = vmatprep.subr.mxu0 0.0
        %1026 = vmatpush1.xpose.msra.mxu0 %v968
        %1027 = vmatprep.subr.mxu0 0.0
        %1028 = vmatpush1.xpose.msra.mxu0 %v965
        %1029 = vmatprep.subr.mxu0 0.0
        %1030 = vmatpush1.xpose.msra.mxu0 %v962
        %1031 = vmatprep.subr.mxu0 0.0
        %1032 = vmatpush1.xpose.msra.mxu0 %v959
        %1033 = vmatprep.subr.mxu0 0.0
        %1034 = vmatpush1.xpose.msra.mxu0 %v956
        %1035 = vmatprep.subr.mxu0 0.0
        %1036 = vmatpush2.xpose.msra.mxu0 0.0
        %1037 = vmatprep.subr.mxu0 0.0
        %1038 = vmatpush2.xpose.msra.mxu0 0.0
        %1039 = vmatprep.subr.mxu0 0.0
        %1040 = vmatpush2.xpose.msra.mxu0 0.0
        %1041 = vmatprep.subr.mxu0 0.0
        %1042 = vmatpush2.xpose.msra.mxu0 0.0
        %1043 = vmatprep.subr.mxu0 0.0
        %1044 = vmatpush2.xpose.msra.mxu0 0.0
        %1045 = vmatprep.subr.mxu0 0.0
        %1046 = vmatpush2.xpose.msra.mxu0 0.0
        %1047 = vmatprep.subr.mxu0 0.0
        %1048 = vmatpush2.xpose.msra.mxu0 0.0
        %1049 = vmatprep.subr.mxu0 0.0
        %1050 = vmatpush2.xpose.msra.mxu0 0.0
        %1051 = vmatprep.subr.mxu0 0.0
        %1052 = vmatpush2.xpose.msra.mxu0 0.0
        %1053 = vmatprep.subr.mxu0 0.0
        %1054 = vmatpush2.xpose.msra.mxu0 0.0
        %1055 = vmatprep.subr.mxu0 0.0
        %1056 = vmatpush2.xpose.msra.mxu0 0.0
        %1057 = vmatprep.subr.mxu0 0.0
        %1058 = vmatpush2.xpose.msra.mxu0 0.0
        %1059 = vmatprep.subr.mxu0 0.0
        %1060 = vmatpush2.xpose.msra.mxu0 0.0
        %1061 = vmatprep.subr.mxu0 0.0
        %1062 = vmatpush2.xpose.msra.mxu0 0.0
        %1063 = vmatprep.subr.mxu0 0.0
        %1064 = vmatpush2.xpose.msra.mxu0 0.0
        %1065 = vmatprep.subr.mxu0 0.0
        %1066 = vmatpush2.xpose.msra.mxu0 0.0
        %1067 = vmatprep.mubr.f32.mxu0 0.0
        %1068 = vmatmul.mubr.f32.gmra.mxu0 %v953
        %v1069 = vpop.f32.mrf.mxu0
        %v1070 = vadd.f32 %v951, %v1069
        %v1071 = vpop.f32.mrf.mxu0
        %1072 = vdwg.mxu0
        %1073 = vst [vmem:[%s342] sm:$0x1] %v1070
        %s1074 = sand.u32 %s231, 1
        %s1075 = scalar_lea.sflag [#allocation4], %s1074
        %s1076 = sand.u32 %s231, 1
        %s1077 = scalar_lea.vmem [#allocation3], %s1076
        // Predicated region
        $region57: #{tpu_custom_call.1} parent=55 // pred_check
          %p1078 = pneg %p241
        $region58: #{tpu_custom_call.1} parent=55 // pred_check_branch
          %1080 = sbr.rel (%p1078) target = $region60
        $region59: #{tpu_custom_call.1} parent=55 // pred_region
          %s1082 = ssub.s32 16, 16
          %1083 = vsyncadd %s1075, %s1082
          %s1084 = smul.addr %s24, 16
          %s1085 = scalar_lea.hbm %s9, %s1084
          %s1087 = sshll.u32 %s1077, 4
          %s1088 = int_to_ptr.vmem [resolvable:$true] %s1087
          %1090 = dma.vmem_to_hbm [thread:$0]  %s1088, 16, %s1085, %s1075
        $region60: #{tpu_custom_call.1} parent=55 // pred_fallthru
          _
      $region56: #{tpu_custom_call.1} parent=5 // pred_fallthru
        _
      %p1091 = scmp.le.s32.totalorder 2, %s19
      // Predicated region
      $region61: #{tpu_custom_call.1} parent=5 // pred_check
        %p1092 = pneg %p1091
      $region62: #{tpu_custom_call.1} parent=5 // pred_check_branch
        %1094 = sbr.rel (%p1092) target = $region64
      $region63: #{tpu_custom_call.1} parent=5 // pred_region
        %s1095 = ssub.s32 %s19, 2
        // Predicated region
        $region65: #{tpu_custom_call.1} parent=63 // pred_check
          %p1096 = pneg %p247
        $region66: #{tpu_custom_call.1} parent=63 // pred_check_branch
          %1098 = sbr.rel (%p1096) target = $region68
        $region67: #{tpu_custom_call.1} parent=63 // pred_region
          %s1099 = sand.u32 %s232, 1
          %s1100 = scalar_lea.sflag [#allocation4], %s1099
          %s1101 = sand.u32 %s232, 1
          %s1102 = scalar_lea.vmem [#allocation3], %s1101
          %1103 = dma.done %s1100, 16
        $region68: #{tpu_custom_call.1} parent=63 // pred_fallthru
          _
      $region64: #{tpu_custom_call.1} parent=5 // pred_fallthru
        _
    $region6: #{tpu_custom_call.1} parent=1 // loop_footer
      %s23 = sadd.s32 1, %s19
    $region7: #{tpu_custom_call.1} parent=1 // loop_footer_branch
      %18 = sbr.rel target = $region3
    $region8: #{tpu_custom_call.1} parent=1 // loop_exit
      _
    %1104 = vsyncpa [#allocation4], 1
    %s1105 = scalar_lea.sflag [#allocation4], 1
    %1106 = vsyncpa %s1105, 1

</llo_original>
